<compile_context>
chip_gen: v6e
topology: v6e:2x2x1
jax: 0.10.0
libtpu: 0.0.40
codegen_flags: <defaults>
</compile_context>

<pallas_src>
import jax
import jax.numpy as jnp
from jax.experimental import pallas as pl
from jax.experimental.pallas import tpu as pltpu

EPS = 1e-6
_TARGET_BLOCK_ELEMS = 512 * 1024  # ~2 MiB per f32 block buffer


def _mld_kernel(s_ref, t_ref, o_ref):
    # Elementwise hot path on one (block_rows, wide) VMEM tile.
    eps = jnp.float32(EPS)
    one = jnp.float32(1.0)
    # Cast to f32 on load (inputs arrive in their native dtype).
    s = jnp.clip(s_ref[...].astype(jnp.float32), eps, one - eps)
    t = jnp.clip(t_ref[...].astype(jnp.float32), eps, one - eps)
    # KLDivLoss(reduction='none', log_target=False) twice, with only 2 logs/elem:
    #   t*(log t - log s) + (1-t)*(log(1-t) - log(1-s))
    # = t*log(t/s)        + (1-t)*log((1-t)/(1-s))
    kl1 = t * jnp.log(t / s)
    kl2 = (one - t) * jnp.log((one - t) / (one - s))
    o_ref[...] = (kl1 + kl2).astype(o_ref.dtype)


def _choose_wide(n: int):
    # Largest lane-dense width (multiple of 128) that divides n exactly.
    for w in (4096, 2048, 1024, 512, 256, 128):
        if n % w == 0:
            return w
    return None


def mld_loss(student: jax.Array, teacher: jax.Array) -> jax.Array:
    assert student.shape == teacher.shape
    orig_shape = student.shape
    orig_dtype = student.dtype
    n = student.size

    s_flat = student.reshape(-1)
    t_flat = teacher.reshape(-1)

    wide = _choose_wide(n)
    pad = 0
    if wide is None:
        # Ragged size: pad once (in the native dtype) up to a multiple of 8*1024.
        wide = 1024
        chunk = 8 * wide
        n_pad = pl.cdiv(n, chunk) * chunk
        pad = n_pad - n
        fill = jnp.asarray(0.5, orig_dtype)
        s_flat = jnp.pad(s_flat, (0, pad), constant_values=fill)
        t_flat = jnp.pad(t_flat, (0, pad), constant_values=fill)

    rows = s_flat.size // wide
    s2d = s_flat.reshape(rows, wide)
    t2d = t_flat.reshape(rows, wide)

    # Block rows: ~2 MiB of f32 per buffer; always a multiple of 8 (or == rows).
    br = max(8, _TARGET_BLOCK_ELEMS // wide)
    br = (br // 8) * 8
    br = min(br, rows)
    grid = (pl.cdiv(rows, br),)

    out2d = pl.pallas_call(
        _mld_kernel,
        out_shape=jax.ShapeDtypeStruct((rows, wide), orig_dtype),
        grid_spec=pltpu.PrefetchScalarGridSpec(
            num_scalar_prefetch=0,
            grid=grid,
            in_specs=[
                pl.BlockSpec((br, wide), lambda i: (i, 0)),
                pl.BlockSpec((br, wide), lambda i: (i, 0)),
            ],
            out_specs=pl.BlockSpec((br, wide), lambda i: (i, 0)),
        ),
        compiler_params=pltpu.CompilerParams(
            dimension_semantics=("parallel",),
            # 2 inputs + 1 output, double-buffered, ~2 MiB each -> ~12 MiB;
            # raise the scoped limit so the v5e 16 MiB default never clamps us,
            # while leaving headroom under v7x's 64 MiB physical VMEM.
            vmem_limit_bytes=48 * 1024 * 1024,
        ),
    )(s2d, t2d)

    out = out2d.reshape(-1)
    if pad:
        out = out[:n]
    return out.reshape(orig_shape)


def _mld_ref(student, teacher):
    eps = EPS
    s = jnp.clip(student.astype(jnp.float32), eps, 1.0 - eps)
    t = jnp.clip(teacher.astype(jnp.float32), eps, 1.0 - eps)
    out = (t * (jnp.log(t) - jnp.log(s))
           + (1.0 - t) * (jnp.log(1.0 - t) - jnp.log(1.0 - s)))
    return out.astype(student.dtype)


if __name__ == "__main__":
    key = jax.random.PRNGKey(0)
    k1, k2, k3, k4 = jax.random.split(key, 4)

    # NCHW probabilities in [0, 1) — same style as the PyTorch module's inputs.
    B, C, H, W = 2, 4, 16, 16
    student = jax.random.uniform(k1, (B, C, H, W), dtype=jnp.float32)
    teacher = jax.random.uniform(k2, (B, C, H, W), dtype=jnp.float32)

    out = mld_loss(student, teacher)
    out = jax.block_until_ready(out)
    ref = _mld_ref(student, teacher)
    assert out.shape == (B, C, H, W)
    assert jnp.allclose(out, ref, atol=2e-5, rtol=2e-5), "mismatch vs reference (fast path)"

    # Ragged shape exercises the padded fallback path.
    student_r = jax.random.uniform(k3, (3, 5, 7, 11), dtype=jnp.float32)
    teacher_r = jax.random.uniform(k4, (3, 5, 7, 11), dtype=jnp.float32)
    out_r = jax.block_until_ready(mld_loss(student_r, teacher_r))
    ref_r = _mld_ref(student_r, teacher_r)
    assert out_r.shape == (3, 5, 7, 11)
    assert jnp.allclose(out_r, ref_r, atol=2e-5, rtol=2e-5), "mismatch vs reference (ragged path)"

    print("KERNEL_OK")
</pallas_src>

<mosaic_0001>
module attributes {stable_mosaic.version = 11 : i64} {
  func.func @_mld_kernel(%arg0: i32, %arg1: memref<1x2048xf32, #tpu.memory_space<vmem>>, %arg2: memref<1x2048xf32, #tpu.memory_space<vmem>>, %arg3: memref<1x2048xf32, #tpu.memory_space<vmem>>) attributes {dimension_semantics = [#tpu.dimension_semantics<parallel>], iteration_bounds = array<i64: 1>, scalar_prefetch = 0 : i64, scratch_operands = 0 : i64, tpu.core_type = #tpu.core_type<tc>, window_params = [{transform_indices = @transform_0, window_bounds = array<i64: 1, 2048>}, {transform_indices = @transform_1, window_bounds = array<i64: 1, 2048>}, {transform_indices = @transform_2, window_bounds = array<i64: 1, 2048>}]} {
    %c0 = arith.constant 0 : index
    %c0_0 = arith.constant 0 : index
    %0 = vector.load %arg1[%c0, %c0_0] : memref<1x2048xf32, #tpu.memory_space<vmem>>, vector<1x2048xf32>
    %cst = arith.constant 1.000000e+00 : f32
    %cst_1 = arith.constant 9.99999997E-7 : f32
    %1 = arith.subf %cst, %cst_1 : f32
    %cst_2 = arith.constant 9.99999997E-7 : f32
    %2 = vector.broadcast %cst_2 : f32 to vector<1x2048xf32>
    %3 = arith.maximumf %2, %0 : vector<1x2048xf32>
    %4 = vector.broadcast %1 : f32 to vector<1x2048xf32>
    %5 = arith.minimumf %4, %3 : vector<1x2048xf32>
    %c0_3 = arith.constant 0 : index
    %c0_4 = arith.constant 0 : index
    %6 = vector.load %arg2[%c0_3, %c0_4] : memref<1x2048xf32, #tpu.memory_space<vmem>>, vector<1x2048xf32>
    %cst_5 = arith.constant 1.000000e+00 : f32
    %cst_6 = arith.constant 9.99999997E-7 : f32
    %7 = arith.subf %cst_5, %cst_6 : f32
    %cst_7 = arith.constant 9.99999997E-7 : f32
    %8 = vector.broadcast %cst_7 : f32 to vector<1x2048xf32>
    %9 = arith.maximumf %8, %6 : vector<1x2048xf32>
    %10 = vector.broadcast %7 : f32 to vector<1x2048xf32>
    %11 = arith.minimumf %10, %9 : vector<1x2048xf32>
    %12 = arith.divf %11, %5 : vector<1x2048xf32>
    %13 = math.log %12 : vector<1x2048xf32>
    %14 = arith.mulf %11, %13 : vector<1x2048xf32>
    %cst_8 = arith.constant 1.000000e+00 : f32
    %15 = vector.broadcast %cst_8 : f32 to vector<1x2048xf32>
    %16 = arith.subf %15, %11 : vector<1x2048xf32>
    %cst_9 = arith.constant 1.000000e+00 : f32
    %17 = vector.broadcast %cst_9 : f32 to vector<1x2048xf32>
    %18 = arith.subf %17, %11 : vector<1x2048xf32>
    %cst_10 = arith.constant 1.000000e+00 : f32
    %19 = vector.broadcast %cst_10 : f32 to vector<1x2048xf32>
    %20 = arith.subf %19, %5 : vector<1x2048xf32>
    %21 = arith.divf %18, %20 : vector<1x2048xf32>
    %22 = math.log %21 : vector<1x2048xf32>
    %23 = arith.mulf %16, %22 : vector<1x2048xf32>
    %24 = arith.addf %14, %23 : vector<1x2048xf32>
    %c0_11 = arith.constant 0 : index
    %c0_12 = arith.constant 0 : index
    %25 = vector.load %arg3[%c0_11, %c0_12] : memref<1x2048xf32, #tpu.memory_space<vmem>>, vector<1x2048xf32>
    tpu.vector_store %arg3[%c0_11, %c0_12], %24 {strides = array<i32>} : memref<1x2048xf32, #tpu.memory_space<vmem>>, vector<1x2048xf32>,
    return
  }
  func.func @transform_0(%arg0: i32) -> (i32, i32) {
    %c0_i32 = arith.constant 0 : i32
    %c0_i32_0 = arith.constant 0 : i32
    return %arg0, %c0_i32 : i32, i32
  }
  func.func @transform_1(%arg0: i32) -> (i32, i32) {
    %c0_i32 = arith.constant 0 : i32
    %c0_i32_0 = arith.constant 0 : i32
    return %arg0, %c0_i32 : i32, i32
  }
  func.func @transform_2(%arg0: i32) -> (i32, i32) {
    %c0_i32 = arith.constant 0 : i32
    %c0_i32_0 = arith.constant 0 : i32
    return %arg0, %c0_i32 : i32, i32
  }
}

</mosaic_0001>

<llo_original>
// kernel: tpu_custom_call.1
$region0: #{tpu_custom_call.1}
  #allocation0 [shape = 'u32[]', space=smem, size = 0x4, offset = 0x4, fixed_abs, tag = 'smem constant byte address 0x4 - core index']
  #allocation1 [shape = 'u32[144,128]{1,0:T(1,128)}', space=vmem, size = 0x12000, scoped, tag = 'internal scratch']
  %s0 = inlined_call_operand.hbm [shape: f32[1,2048], index: 0, kind: input, shape index: {}]
  %s1 = inlined_call_operand.hbm [shape: f32[1,2048], index: 1, kind: input, shape index: {}]
  %s2 = inlined_call_operand.hbm [shape: f32[1,2048], index: 2, kind: output, shape index: {}]
  %s3 = sld [smem:[#allocation0]]
  $region26: #{tpu_custom_call.1} parent=0
    _
  %s5 = ssub.s32 1, %s3
  %s6 = scalar_select 0, %s5, %s3
  $region1: #{tpu_custom_call.1} parent=0
    #allocation2 [shape = 'u8[8192]{0}', space=vmem, size = 0x2000, scoped, tag = 'input window, operand 0, single buffered']
    #allocation3 [shape = 's32[1]{0}', space=sflag, size = 0x4, scoped, tag = 'scoped memory for tpu_custom_call.1']
    #allocation4 [shape = 's32[1]{0}', space=sflag, size = 0x4, scoped, tag = 'scoped memory for tpu_custom_call.1']
    #allocation5 [shape = 'u8[8192]{0}', space=vmem, size = 0x2000, scoped, tag = 'input window, operand 1, single buffered']
    #allocation6 [shape = 's32[1]{0}', space=sflag, size = 0x4, scoped, tag = 'scoped memory for tpu_custom_call.1']
    #allocation7 [shape = 'u8[8192]{0}', space=vmem, size = 0x2000, scoped, tag = 'output window, operand 0, single buffered']
    %7 = vsyncpa [#allocation3], 0
    %8 = vsyncpa [#allocation6], 0
    %9 = vsyncpa [#allocation4], 0
    // Predicated region
    $region2: #{tpu_custom_call.1} parent=1 // pred_check
      _
    $region3: #{tpu_custom_call.1} parent=1 // pred_check_branch
      %11 = sbr.rel (0) target = $region5
    $region4: #{tpu_custom_call.1} parent=1 // pred_region
      %s13 = ssub.s32 256, 256
      %14 = vsyncadd [#allocation3], %s13
      %s16 = sshll.u32 [#allocation2], 4
      %s17 = int_to_ptr.vmem [resolvable:$true] %s16
      %19 = dma.hbm_to_vmem [thread:$0]  %s0, 256, %s17, [#allocation3]
    $region5: #{tpu_custom_call.1} parent=1 // pred_fallthru
      _
    // Predicated region
    $region6: #{tpu_custom_call.1} parent=1 // pred_check
      _
    $region7: #{tpu_custom_call.1} parent=1 // pred_check_branch
      %21 = sbr.rel (0) target = $region9
    $region8: #{tpu_custom_call.1} parent=1 // pred_region
      %s23 = ssub.s32 256, 256
      %24 = vsyncadd [#allocation6], %s23
      %s26 = sshll.u32 [#allocation5], 4
      %s27 = int_to_ptr.vmem [resolvable:$true] %s26
      %29 = dma.hbm_to_vmem [thread:$0]  %s1, 256, %s27, [#allocation6]
    $region9: #{tpu_custom_call.1} parent=1 // pred_fallthru
      _
    // Predicated region
    $region10: #{tpu_custom_call.1} parent=1 // pred_check
      _
    $region11: #{tpu_custom_call.1} parent=1 // pred_check_branch
      %31 = sbr.rel (0) target = $region13
    $region12: #{tpu_custom_call.1} parent=1 // pred_region
      %32 = dma.done [#allocation3], 256
    $region13: #{tpu_custom_call.1} parent=1 // pred_fallthru
      _
    // Predicated region
    $region14: #{tpu_custom_call.1} parent=1 // pred_check
      _
    $region15: #{tpu_custom_call.1} parent=1 // pred_check_branch
      %34 = sbr.rel (0) target = $region17
    $region16: #{tpu_custom_call.1} parent=1 // pred_region
      %35 = dma.done [#allocation6], 256
    $region17: #{tpu_custom_call.1} parent=1 // pred_fallthru
      _
    %v36 = vld [vmem:[#allocation2] sm:$0xff]
    %v37 = vld [vmem:[#allocation2 + $0x8] sm:$0xff]
    %v38 = vmax.f32 %v36, 1e-06
    %v39 = vmax.f32 %v37, 1e-06
    %v40 = vmin.f32 %v38, 0.999999
    %v41 = vmin.f32 %v39, 0.999999
    %v42 = vld [vmem:[#allocation5] sm:$0xff]
    %v43 = vld [vmem:[#allocation5 + $0x8] sm:$0xff]
    %v44 = vmax.f32 %v42, 1e-06
    %v45 = vmax.f32 %v43, 1e-06
    %v46 = vmin.f32 %v44, 0.999999
    %v47 = vmin.f32 %v45, 0.999999
    %v48 = vrcp.pop %v40
    %v49 = vmul.f32 %v46, %v48
    %v50 = vrcp.pop %v41
    %v51 = vmul.f32 %v47, %v50
    %v52 = vlog2.pop %v49
    %v53 = vmul.f32 %v52, 0.6931472
    %v54 = vlog2.pop %v51
    %v55 = vmul.f32 %v54, 0.6931472
    %v56 = vmul.f32 %v46, %v53
    %v57 = vmul.f32 %v47, %v55
    %v58 = vsub.f32 1.0, %v46
    %v59 = vsub.f32 1.0, %v47
    %v60 = vsub.f32 1.0, %v40
    %v61 = vsub.f32 1.0, %v41
    %v62 = vrcp.pop %v60
    %v63 = vmul.f32 %v58, %v62
    %v64 = vrcp.pop %v61
    %v65 = vmul.f32 %v59, %v64
    %v66 = vlog2.pop %v63
    %v67 = vmul.f32 %v66, 0.6931472
    %v68 = vlog2.pop %v65
    %v69 = vmul.f32 %v68, 0.6931472
    %v70 = vmul.f32 %v58, %v67
    %v71 = vmul.f32 %v59, %v69
    %v72 = vadd.f32 %v56, %v70
    %v73 = vadd.f32 %v57, %v71
    %74 = vst [vmem:[#allocation7] sm:$0xff] %v72
    %75 = vst [vmem:[#allocation7 + $0x8] sm:$0xff] %v73
    // Predicated region
    $region18: #{tpu_custom_call.1} parent=1 // pred_check
      _
    $region19: #{tpu_custom_call.1} parent=1 // pred_check_branch
      %77 = sbr.rel (0) target = $region21
    $region20: #{tpu_custom_call.1} parent=1 // pred_region
      %s79 = ssub.s32 256, 256
      %80 = vsyncadd [#allocation4], %s79
      %s82 = sshll.u32 [#allocation7], 4
      %s83 = int_to_ptr.vmem [resolvable:$true] %s82
      %85 = dma.vmem_to_hbm [thread:$0]  %s83, 256, %s2, [#allocation4]
    $region21: #{tpu_custom_call.1} parent=1 // pred_fallthru
      _
    // Predicated region
    $region22: #{tpu_custom_call.1} parent=1 // pred_check
      _
    $region23: #{tpu_custom_call.1} parent=1 // pred_check_branch
      %87 = sbr.rel (0) target = $region25
    $region24: #{tpu_custom_call.1} parent=1 // pred_region
      %88 = dma.done [#allocation4], 256
    $region25: #{tpu_custom_call.1} parent=1 // pred_fallthru
      _
    %89 = vsyncpa [#allocation3], 1
    %90 = vsyncpa [#allocation6], 1
    %91 = vsyncpa [#allocation4], 1

</llo_original>
